<compile_context>
chip_gen: v7x
topology: tpu7x:2x2x1
jax: 0.10.0
libtpu: 0.0.40
codegen_flags: <defaults>
</compile_context>

<pallas_src>
import math

import jax
import jax.numpy as jnp
from jax.experimental import pallas as pl
from jax.experimental.pallas import tpu as pltpu


# --------------------------------------------------------------------------
# helpers
# --------------------------------------------------------------------------
def _round_up(a: int, b: int) -> int:
    return ((a + b - 1) // b) * b


def _cdiv(a: int, b: int) -> int:
    return -(-a // b)


def _vmem_budget() -> int:
    """~75% of this generation's per-core VMEM (48 MiB fallback)."""
    cap = 64 << 20
    try:
        cap = int(pltpu.get_tpu_info().vmem_capacity_bytes)
    except Exception:
        pass
    cap = max(32 << 20, min(cap, 128 << 20))
    return (cap * 3) // 4


def _pick_row_tile(n: int, tm_target: int, max_waste: float = 1.25):
    """Row tile: as MXU-friendly as possible without padding N by >25%."""
    for align in (256, 128, 8):
        steps = max(1, _cdiv(n, tm_target))
        tm = _round_up(_cdiv(n, steps), align)
        steps = _cdiv(n, tm)
        n_pad = tm * steps
        if n_pad <= max_waste * n or align == 8:
            return tm, steps, n_pad
    raise AssertionError("unreachable")


def _largest_k_tile(kp: int, tk_cap: int) -> int:
    """Largest multiple of 128 that divides kp and is <= tk_cap."""
    tk = max(128, (min(tk_cap, kp) // 128) * 128)
    while kp % tk != 0:
        tk -= 128
    return tk


# --------------------------------------------------------------------------
# kernels
# --------------------------------------------------------------------------
def _selector_logits_kernel(x_ref, w_ref, b_ref, out_ref):
    # x_ref : (tm, Kp)   row tile of inputs (contraction dim whole)
    # w_ref : (Kp, tn)   class tile of pre-transposed relation matrix
    # b_ref : (1, tn)    bias slice (broadcast over rows)
    out_ref[...] = (
        jnp.dot(x_ref[...], w_ref[...], preferred_element_type=jnp.float32)
        + b_ref[...]
    ).astype(out_ref.dtype)


def _selector_logits_kernel_ktiled(x_ref, w_ref, b_ref, out_ref, acc_ref):
    # Same as above but the contraction dim is tiled (grid axis 2, "arbitrary")
    # with an f32 VMEM accumulator.
    @pl.when(pl.program_id(2) == 0)
    def _():
        acc_ref[...] = jnp.zeros_like(acc_ref)

    acc_ref[...] += jnp.dot(
        x_ref[...], w_ref[...], preferred_element_type=jnp.float32
    )

    @pl.when(pl.program_id(2) == pl.num_programs(2) - 1)
    def _():
        out_ref[...] = (acc_ref[...] + b_ref[...]).astype(out_ref.dtype)


# --------------------------------------------------------------------------
# parameter prep (done ONCE, not per call)
# --------------------------------------------------------------------------
def prepare_selector_params(relation_matrix, bias, *, compute_dtype=jnp.float32):
    """One-time layout transform of Selector parameters.

    relation_matrix : (num_classes, relation_dim)
    bias            : (num_classes,)

    Returns:
      w_t    : (Kp, Cp) — transposed, zero-padded weight; Kp/Cp multiples of 128
      bias_p : (1, Cp)  — zero-padded float32 bias
    """
    num_classes, relation_dim = relation_matrix.shape
    kp = _round_up(relation_dim, 128)
    cp = _round_up(num_classes, 128)
    w_t = jnp.pad(
        relation_matrix.astype(compute_dtype).T,
        ((0, kp - relation_dim), (0, cp - num_classes)),
    )
    bias_p = jnp.pad(bias.astype(jnp.float32), (0, cp - num_classes)).reshape(1, cp)
    return w_t, bias_p


# --------------------------------------------------------------------------
# wrapper
# --------------------------------------------------------------------------
def selector_get_logits(x, w_t, bias_p, num_classes, *,
                        tm_target=512, tn_target=512, tk_target=1024):
    """logits = x @ relation_matrix.T + bias  via a Pallas TPU kernel.

    x      : (N, relation_dim)
    w_t    : (Kp, Cp)  from prepare_selector_params (pre-transposed, padded)
    bias_p : (1, Cp)   from prepare_selector_params
    """
    n, relation_dim = x.shape
    kp, cp = w_t.shape
    assert relation_dim <= kp and num_classes <= cp
    compute_dtype = w_t.dtype
    bpe = jnp.dtype(compute_dtype).itemsize

    budget = _vmem_budget()

    # ---- row tiling (minimize padding waste, prefer MXU-sized tiles) -----
    tm_eff, n_rows, n_pad = _pick_row_tile(n, tm_target)

    # ---- K tiling decision ------------------------------------------------
    tn_probe = min(_round_up(tn_target, 128), cp)
    if 2 * bpe * kp * (tm_eff + tn_probe) <= budget // 2:
        tk_eff = kp                                   # keep K whole
    else:
        tk_eff = _largest_k_tile(kp, tk_target)       # bound VMEM on big K
    k_steps = kp // tk_eff

    def tiles_bytes(tn):
        # double-buffered input/output tiles (+ accumulator if K-tiled)
        return (2 * bpe * (tm_eff * tk_eff + tk_eff * tn)
                + 2 * 4 * tn
                + 2 * 4 * tm_eff * tn
                + (4 * tm_eff * tn if k_steps > 1 else 0))

    # ---- class tiling: full residency first, else divisor tiles of Cp -----
    if tiles_bytes(cp) <= budget:
        tn_eff = cp                                   # W DMA'd exactly once
    else:
        tn_eff = 128
        tn_cap = min(_round_up(tn_target, 128), cp)
        for tn in range(tn_cap, 127, -128):
            if cp % tn == 0 and tiles_bytes(tn) <= budget:
                tn_eff = tn
                break
    n_cols = cp // tn_eff

    # ---- megacore: avoid a (1,1) grid on sizeable problems ----------------
    if n_rows == 1 and n_cols == 1 and k_steps == 1 and n_pad >= 512 and n_pad % 256 == 0:
        tm_eff = n_pad // 2
        n_rows = 2

    # ---- per-call input padding (rows + K lanes) ---------------------------
    x_p = x.astype(compute_dtype)
    if n_pad != n or kp != relation_dim:
        x_p = jnp.pad(x_p, ((0, n_pad - n), (0, kp - relation_dim)))

    # ---- grid / specs -------------------------------------------------------
    if k_steps == 1:
        grid = (n_rows, n_cols)
        in_specs = [
            pl.BlockSpec((tm_eff, kp), lambda i, j: (i, 0)),
            pl.BlockSpec((kp, tn_eff), lambda i, j: (0, j)),
            pl.BlockSpec((1, tn_eff), lambda i, j: (0, j)),
        ]
        out_spec = pl.BlockSpec((tm_eff, tn_eff), lambda i, j: (i, j))
        scratch = []
        kernel = _selector_logits_kernel
        dims = ("parallel", "parallel")
    else:
        grid = (n_rows, n_cols, k_steps)
        in_specs = [
            pl.BlockSpec((tm_eff, tk_eff), lambda i, j, k: (i, k)),
            pl.BlockSpec((tk_eff, tn_eff), lambda i, j, k: (k, j)),
            pl.BlockSpec((1, tn_eff), lambda i, j, k: (0, j)),
        ]
        out_spec = pl.BlockSpec((tm_eff, tn_eff), lambda i, j, k: (i, j))
        scratch = [pltpu.VMEM((tm_eff, tn_eff), jnp.float32)]
        kernel = _selector_logits_kernel_ktiled
        dims = ("parallel", "parallel", "arbitrary")

    vmem_limit = int(min(budget, max(2 * tiles_bytes(tn_eff), 16 << 20)))

    cost = pl.CostEstimate(
        flops=2 * n_pad * cp * kp,
        transcendentals=0,
        bytes_accessed=int(x_p.size * bpe + w_t.size * bpe
                           + bias_p.size * 4 + n_pad * cp * 4),
    )

    out = pl.pallas_call(
        kernel,
        out_shape=jax.ShapeDtypeStruct((n_pad, cp), jnp.float32),
        grid_spec=pltpu.PrefetchScalarGridSpec(
            num_scalar_prefetch=0,
            grid=grid,
            in_specs=in_specs,
            out_specs=out_spec,
            scratch_shapes=scratch,
        ),
        compiler_params=pltpu.CompilerParams(
            dimension_semantics=dims,
            vmem_limit_bytes=vmem_limit,
        ),
        cost_estimate=cost,
    )(x_p, w_t, bias_p)

    # strip row / class padding (padded W columns and bias are zero)
    return out[:n, :num_classes]


# --------------------------------------------------------------------------
# init mirroring Selector.init_weights()
# --------------------------------------------------------------------------
def init_selector_params(key, num_classes, relation_dim):
    k_rel, k_bias, k_att = jax.random.split(key, 3)
    bound = math.sqrt(6.0 / (num_classes + relation_dim))   # xavier_uniform_
    relation_matrix = jax.random.uniform(
        k_rel, (num_classes, relation_dim), jnp.float32, -bound, bound
    )
    bias = jax.random.normal(k_bias, (num_classes,), jnp.float32)
    attention_matrix = jax.random.uniform(
        k_att, (num_classes, relation_dim), jnp.float32, -bound, bound
    )
    return relation_matrix, bias, attention_matrix


if __name__ == "__main__":
    key = jax.random.PRNGKey(0)
    k_params, k_x, k_x2 = jax.random.split(key, 3)

    # --- config 1: small, exercises K<128 / C<128 / N<tile padding paths ---
    num_classes, relation_dim, N = 12, 64, 40
    relation_matrix, bias, _att = init_selector_params(
        k_params, num_classes, relation_dim
    )
    w_t, bias_p = prepare_selector_params(relation_matrix, bias)   # once
    x = jax.random.normal(k_x, (N, relation_dim), jnp.float32)

    logits = jax.block_until_ready(
        selector_get_logits(x, w_t, bias_p, num_classes)
    )
    ref = jnp.matmul(x, relation_matrix.T,
                     precision=jax.lax.Precision.HIGHEST) + bias[None, :]
    assert logits.shape == (N, num_classes)
    assert jnp.allclose(logits, ref, atol=2e-2, rtol=2e-2), "config-1 mismatch"

    # --- config 2: exercises multi-row-tile grid + non-aligned K/C ---------
    num_classes2, relation_dim2, N2 = 300, 200, 600
    rel2, bias2, _ = init_selector_params(k_params, num_classes2, relation_dim2)
    w_t2, bias_p2 = prepare_selector_params(rel2, bias2)
    x2 = jax.random.normal(k_x2, (N2, relation_dim2), jnp.float32)

    logits2 = jax.block_until_ready(
        selector_get_logits(x2, w_t2, bias_p2, num_classes2)
    )
    ref2 = jnp.matmul(x2, rel2.T,
                      precision=jax.lax.Precision.HIGHEST) + bias2[None, :]
    assert logits2.shape == (N2, num_classes2)
    assert jnp.allclose(logits2, ref2, atol=5e-2, rtol=2e-2), "config-2 mismatch"

    print("KERNEL_OK")
</pallas_src>

<mosaic_0001>
module attributes {stable_mosaic.version = 11 : i64} {
  func.func @_selector_logits_kernel(%arg0: i32, %arg1: i32, %arg2: memref<40x128xf32, #tpu.memory_space<vmem>>, %arg3: memref<128x128xf32, #tpu.memory_space<vmem>>, %arg4: memref<1x128xf32, #tpu.memory_space<vmem>>, %arg5: memref<40x128xf32, #tpu.memory_space<vmem>>) attributes {dimension_semantics = [#tpu.dimension_semantics<parallel>, #tpu.dimension_semantics<parallel>], iteration_bounds = array<i64: 1, 1>, scalar_prefetch = 0 : i64, scratch_operands = 0 : i64, tpu.core_type = #tpu.core_type<tc>, window_params = [{transform_indices = @transform_0, window_bounds = array<i64: 40, 128>}, {transform_indices = @transform_1, window_bounds = array<i64: 128, 128>}, {transform_indices = @transform_2, window_bounds = array<i64: 1, 128>}, {transform_indices = @transform_3, window_bounds = array<i64: 40, 128>}]} {
    %c0 = arith.constant 0 : index
    %c0_0 = arith.constant 0 : index
    %0 = vector.load %arg2[%c0, %c0_0] : memref<40x128xf32, #tpu.memory_space<vmem>>, vector<40x128xf32>
    %c0_1 = arith.constant 0 : index
    %c0_2 = arith.constant 0 : index
    %1 = vector.load %arg3[%c0_1, %c0_2] : memref<128x128xf32, #tpu.memory_space<vmem>>, vector<128x128xf32>
    %cst = arith.constant dense<0.000000e+00> : vector<40x128xf32>
    %2 = tpu.matmul %0, %1, %cst {dimension_numbers = #tpu.dot_dimension_numbers<[1], [0], [0], [1], [0, 0, 1, 1], [], []>} : vector<40x128xf32>, vector<128x128xf32>, vector<40x128xf32> -> vector<40x128xf32>
    %c0_3 = arith.constant 0 : index
    %c0_4 = arith.constant 0 : index
    %3 = vector.load %arg4[%c0_3, %c0_4] : memref<1x128xf32, #tpu.memory_space<vmem>>, vector<1x128xf32>
    %4 = vector.broadcast %3 : vector<1x128xf32> to vector<40x128xf32>
    %5 = arith.addf %2, %4 : vector<40x128xf32>
    %c0_5 = arith.constant 0 : index
    %c0_6 = arith.constant 0 : index
    %6 = vector.load %arg5[%c0_5, %c0_6] : memref<40x128xf32, #tpu.memory_space<vmem>>, vector<40x128xf32>
    tpu.vector_store %arg5[%c0_5, %c0_6], %5 {strides = array<i32>} : memref<40x128xf32, #tpu.memory_space<vmem>>, vector<40x128xf32>,
    return
  }
  func.func @transform_0(%arg0: i32, %arg1: i32) -> (i32, i32) {
    %c0_i32 = arith.constant 0 : i32
    %c0_i32_0 = arith.constant 0 : i32
    return %arg0, %c0_i32 : i32, i32
  }
  func.func @transform_1(%arg0: i32, %arg1: i32) -> (i32, i32) {
    %c0_i32 = arith.constant 0 : i32
    %c0_i32_0 = arith.constant 0 : i32
    return %c0_i32, %arg1 : i32, i32
  }
  func.func @transform_2(%arg0: i32, %arg1: i32) -> (i32, i32) {
    %c0_i32 = arith.constant 0 : i32
    %c0_i32_0 = arith.constant 0 : i32
    return %c0_i32, %arg1 : i32, i32
  }
  func.func @transform_3(%arg0: i32, %arg1: i32) -> (i32, i32) {
    %c0_i32 = arith.constant 0 : i32
    return %arg0, %arg1 : i32, i32
  }
}

</mosaic_0001>

<llo_original>
// kernel: tpu_custom_call.1
$region0: #{tpu_custom_call.1}
  #allocation0 [shape = 'u32[]', space=smem, size = 0x4, offset = 0x4, fixed_abs, tag = 'smem constant byte address 0x4 - core index']
  #allocation1 [shape = 'u32[144,128]{1,0:T(1,128)}', space=vmem, size = 0x12000, scoped, tag = 'internal scratch']
  %s0 = inlined_call_operand.hbm [shape: f32[40,128], index: 0, kind: input, shape index: {}]
  %s1 = inlined_call_operand.hbm [shape: f32[128,128], index: 1, kind: input, shape index: {}]
  %s2 = inlined_call_operand.vmem [shape: f32[1,128], index: 2, kind: input, shape index: {}]
  %s3 = inlined_call_operand.hbm [shape: f32[40,128], index: 3, kind: output, shape index: {}]
  %s4 = sld [smem:[#allocation0]]
  $region30: #{tpu_custom_call.1} parent=0
    _
  %s6 = ssub.s32 1, %s4
  %s7 = scalar_select 0, %s6, %s4
  $region1: #{tpu_custom_call.1} parent=0
    #allocation2 [shape = 'u8[20480]{0}', space=vmem, size = 0x5000, scoped, tag = 'input window, operand 0, single buffered']
    #allocation3 [shape = 's32[1]{0}', space=sflag, size = 0x4, scoped, tag = 'scoped memory for tpu_custom_call.1']
    #allocation4 [shape = 's32[1]{0}', space=sflag, size = 0x4, scoped, tag = 'scoped memory for tpu_custom_call.1']
    #allocation5 [shape = 'u8[65536]{0}', space=vmem, size = 0x10000, scoped, tag = 'input window, operand 1, single buffered']
    #allocation6 [shape = 's32[1]{0}', space=sflag, size = 0x4, scoped, tag = 'scoped memory for tpu_custom_call.1']
    #allocation7 [shape = 'u8[20480]{0}', space=vmem, size = 0x5000, scoped, tag = 'output window, operand 0, single buffered']
    %8 = vsyncpa [#allocation3], 0
    %9 = vsyncpa [#allocation6], 0
    %10 = vsyncpa [#allocation4], 0
    // Predicated region
    $region2: #{tpu_custom_call.1} parent=1 // pred_check
      _
    $region3: #{tpu_custom_call.1} parent=1 // pred_check_branch
      %12 = sbr.rel (0) target = $region5
    $region4: #{tpu_custom_call.1} parent=1 // pred_region
      %s14 = ssub.s32 640, 640
      %15 = vsyncadd [#allocation3], %s14
      %s16 = sshll.u32 [#allocation2], 4
      %s17 = int_to_ptr.vmem [resolvable:$true] %s16
      %22 = dma.hbm_to_vmem [thread:$0]  %s0, 640, %s17, [#allocation3], 128, 128, 8
    $region5: #{tpu_custom_call.1} parent=1 // pred_fallthru
      _
    // Predicated region
    $region6: #{tpu_custom_call.1} parent=1 // pred_check
      _
    $region7: #{tpu_custom_call.1} parent=1 // pred_check_branch
      %24 = sbr.rel (0) target = $region9
    $region8: #{tpu_custom_call.1} parent=1 // pred_region
      %s26 = ssub.s32 2048, 2048
      %27 = vsyncadd [#allocation6], %s26
      %s28 = sshll.u32 [#allocation5], 4
      %s29 = int_to_ptr.vmem [resolvable:$true] %s28
      %34 = dma.hbm_to_vmem [thread:$0]  %s1, 2048, %s29, [#allocation6], 128, 128, 8
    $region9: #{tpu_custom_call.1} parent=1 // pred_fallthru
      _
    // Predicated region
    $region10: #{tpu_custom_call.1} parent=1 // pred_check
      _
    $region11: #{tpu_custom_call.1} parent=1 // pred_check_branch
      %36 = sbr.rel (0) target = $region13
    $region12: #{tpu_custom_call.1} parent=1 // pred_region
      _
    $region13: #{tpu_custom_call.1} parent=1 // pred_fallthru
      _
    // Predicated region
    $region14: #{tpu_custom_call.1} parent=1 // pred_check
      _
    $region15: #{tpu_custom_call.1} parent=1 // pred_check_branch
      %38 = sbr.rel (0) target = $region17
    $region16: #{tpu_custom_call.1} parent=1 // pred_region
      %39 = dma.done [#allocation3], 640
    $region17: #{tpu_custom_call.1} parent=1 // pred_fallthru
      _
    // Predicated region
    $region18: #{tpu_custom_call.1} parent=1 // pred_check
      _
    $region19: #{tpu_custom_call.1} parent=1 // pred_check_branch
      %41 = sbr.rel (0) target = $region21
    $region20: #{tpu_custom_call.1} parent=1 // pred_region
      %42 = dma.done [#allocation6], 2048
    $region21: #{tpu_custom_call.1} parent=1 // pred_fallthru
      _
    %v43 = vld [vmem:[#allocation2] sm:$0xff]
    %v44 = vld [vmem:[#allocation2 + $0x8] sm:$0xff]
    %v45 = vld [vmem:[#allocation2 + $0x10] sm:$0xff]
    %v46 = vld [vmem:[#allocation2 + $0x18] sm:$0xff]
    %v47 = vld [vmem:[#allocation2 + $0x20] sm:$0xff]
    %v48 = vld [vmem:[#allocation5] sm:$0xff]
    %v49 = vld [vmem:[#allocation5 + $0x8] sm:$0xff]
    %v50 = vld [vmem:[#allocation5 + $0x10] sm:$0xff]
    %v51 = vld [vmem:[#allocation5 + $0x18] sm:$0xff]
    %v52 = vld [vmem:[#allocation5 + $0x20] sm:$0xff]
    %v53 = vld [vmem:[#allocation5 + $0x28] sm:$0xff]
    %v54 = vld [vmem:[#allocation5 + $0x30] sm:$0xff]
    %v55 = vld [vmem:[#allocation5 + $0x38] sm:$0xff]
    %v56 = vld [vmem:[#allocation5 + $0x40] sm:$0xff]
    %v57 = vld [vmem:[#allocation5 + $0x48] sm:$0xff]
    %v58 = vld [vmem:[#allocation5 + $0x50] sm:$0xff]
    %v59 = vld [vmem:[#allocation5 + $0x58] sm:$0xff]
    %v60 = vld [vmem:[#allocation5 + $0x60] sm:$0xff]
    %v61 = vld [vmem:[#allocation5 + $0x68] sm:$0xff]
    %v62 = vld [vmem:[#allocation5 + $0x70] sm:$0xff]
    %v63 = vld [vmem:[#allocation5 + $0x78] sm:$0xff]
    %v64 = vld [vmem:[%s2] sm:$0x1]
    %v66 = vlaneseq
    %v67 = vshrl.u32 %v66, 7
    %v68 = vsub.s32 0, %v67
    %v69 = vrot.slane %v64, %v68
    %71 = vmatprep.subr.mxu0 0.0
    %72 = vmatpush1.msra.mxu0 %v48
    %73 = vmatprep.subr.mxu0 0.0
    %74 = vmatpush1.msra.mxu0 %v49
    %75 = vmatprep.subr.mxu0 0.0
    %76 = vmatpush1.msra.mxu0 %v50
    %77 = vmatprep.subr.mxu0 0.0
    %78 = vmatpush1.msra.mxu0 %v51
    %79 = vmatprep.subr.mxu0 0.0
    %80 = vmatpush1.msra.mxu0 %v52
    %81 = vmatprep.subr.mxu0 0.0
    %82 = vmatpush1.msra.mxu0 %v53
    %83 = vmatprep.subr.mxu0 0.0
    %84 = vmatpush1.msra.mxu0 %v54
    %85 = vmatprep.subr.mxu0 0.0
    %86 = vmatpush1.msra.mxu0 %v55
    %87 = vmatprep.subr.mxu0 0.0
    %88 = vmatpush1.msra.mxu0 %v56
    %89 = vmatprep.subr.mxu0 0.0
    %90 = vmatpush1.msra.mxu0 %v57
    %91 = vmatprep.subr.mxu0 0.0
    %92 = vmatpush1.msra.mxu0 %v58
    %93 = vmatprep.subr.mxu0 0.0
    %94 = vmatpush1.msra.mxu0 %v59
    %95 = vmatprep.subr.mxu0 0.0
    %96 = vmatpush1.msra.mxu0 %v60
    %97 = vmatprep.subr.mxu0 0.0
    %98 = vmatpush1.msra.mxu0 %v61
    %99 = vmatprep.subr.mxu0 0.0
    %100 = vmatpush1.msra.mxu0 %v62
    %101 = vmatprep.subr.mxu0 0.0
    %102 = vmatpush1.msra.mxu0 %v63
    %103 = vmatprep.subr.mxu0 0.0
    %104 = vmatpush1.msra.mxu0 0.0
    %105 = vmatprep.subr.mxu0 0.0
    %106 = vmatpush1.msra.mxu0 0.0
    %107 = vmatprep.subr.mxu0 0.0
    %108 = vmatpush1.msra.mxu0 0.0
    %109 = vmatprep.subr.mxu0 0.0
    %110 = vmatpush1.msra.mxu0 0.0
    %111 = vmatprep.subr.mxu0 0.0
    %112 = vmatpush1.msra.mxu0 0.0
    %113 = vmatprep.subr.mxu0 0.0
    %114 = vmatpush1.msra.mxu0 0.0
    %115 = vmatprep.subr.mxu0 0.0
    %116 = vmatpush1.msra.mxu0 0.0
    %117 = vmatprep.subr.mxu0 0.0
    %118 = vmatpush1.msra.mxu0 0.0
    %119 = vmatprep.subr.mxu0 0.0
    %120 = vmatpush1.msra.mxu0 0.0
    %121 = vmatprep.subr.mxu0 0.0
    %122 = vmatpush1.msra.mxu0 0.0
    %123 = vmatprep.subr.mxu0 0.0
    %124 = vmatpush1.msra.mxu0 0.0
    %125 = vmatprep.subr.mxu0 0.0
    %126 = vmatpush1.msra.mxu0 0.0
    %127 = vmatprep.subr.mxu0 0.0
    %128 = vmatpush1.msra.mxu0 0.0
    %129 = vmatprep.subr.mxu0 0.0
    %130 = vmatpush1.msra.mxu0 0.0
    %131 = vmatprep.subr.mxu0 0.0
    %132 = vmatpush1.msra.mxu0 0.0
    %133 = vmatprep.subr.mxu0 0.0
    %134 = vmatpush1.msra.mxu0 0.0
    %135 = vmatprep.mubr.f32.mxu0 0.0
    %136 = vmatmul.mubr.f32.gmra.mrb[0].mxu0 %v43
    %v137 = vpop.f32.mrb[0].mxu0
    %v138 = vadd.f32 %v69, %v137
    %v139 = vpop.f32.mrb[0].mxu0
    %140 = vmatprep.mubr.f32.mxu0 0.0
    %141 = vmatmul.mubr.f32.gmra.mrb[0].mxu0 %v44
    %v142 = vpop.f32.mrb[0].mxu0
    %v143 = vadd.f32 %v69, %v142
    %v144 = vpop.f32.mrb[0].mxu0
    %145 = vmatprep.mubr.f32.mxu0 0.0
    %146 = vmatmul.mubr.f32.gmra.mrb[0].mxu0 %v45
    %v147 = vpop.f32.mrb[0].mxu0
    %v148 = vadd.f32 %v69, %v147
    %v149 = vpop.f32.mrb[0].mxu0
    %150 = vmatprep.mubr.f32.mxu0 0.0
    %151 = vmatmul.mubr.f32.gmra.mrb[0].mxu0 %v46
    %v152 = vpop.f32.mrb[0].mxu0
    %v153 = vadd.f32 %v69, %v152
    %v154 = vpop.f32.mrb[0].mxu0
    %155 = vmatprep.mubr.f32.mxu0 0.0
    %156 = vmatmul.mubr.f32.gmra.mrb[0].mxu0 %v47
    %v157 = vpop.f32.mrb[0].mxu0
    %v158 = vadd.f32 %v69, %v157
    %v159 = vpop.f32.mrb[0].mxu0
    %160 = vdwg.mxu0
    %161 = vst [vmem:[#allocation7] sm:$0xff] %v138
    %162 = vst [vmem:[#allocation7 + $0x8] sm:$0xff] %v143
    %163 = vst [vmem:[#allocation7 + $0x10] sm:$0xff] %v148
    %164 = vst [vmem:[#allocation7 + $0x18] sm:$0xff] %v153
    %165 = vst [vmem:[#allocation7 + $0x20] sm:$0xff] %v158
    // Predicated region
    $region22: #{tpu_custom_call.1} parent=1 // pred_check
      _
    $region23: #{tpu_custom_call.1} parent=1 // pred_check_branch
      %167 = sbr.rel (0) target = $region25
    $region24: #{tpu_custom_call.1} parent=1 // pred_region
      %s169 = ssub.s32 640, 640
      %170 = vsyncadd [#allocation4], %s169
      %s171 = sshll.u32 [#allocation7], 4
      %s172 = int_to_ptr.vmem [resolvable:$true] %s171
      %177 = dma.vmem_to_hbm [thread:$0]  %s172, 640, %s3, [#allocation4], 128, 128, 8
    $region25: #{tpu_custom_call.1} parent=1 // pred_fallthru
      _
    // Predicated region
    $region26: #{tpu_custom_call.1} parent=1 // pred_check
      _
    $region27: #{tpu_custom_call.1} parent=1 // pred_check_branch
      %179 = sbr.rel (0) target = $region29
    $region28: #{tpu_custom_call.1} parent=1 // pred_region
      %180 = dma.done [#allocation4], 640
    $region29: #{tpu_custom_call.1} parent=1 // pred_fallthru
      _
    %181 = vsyncpa [#allocation3], 1
    %182 = vsyncpa [#allocation6], 1
    %183 = vsyncpa [#allocation4], 1

</llo_original>
